<compile_context>
chip_gen: v7x
topology: tpu7x:2x2x1
jax: 0.10.0
libtpu: 0.0.40
codegen_flags: <defaults>
</compile_context>

<pallas_src>
import functools

import jax
import jax.numpy as jnp
from jax.experimental import pallas as pl
from jax.experimental.pallas import tpu as pltpu


# ---------------------------------------------------------------------------
# Kernels
# ---------------------------------------------------------------------------
def _rmsnorm_kernel(x_ref, alpha_ref, o_ref, *, eps):
    """Standard path: block is (tile, D) with the whole hidden dim per block."""
    x = x_ref[...].astype(jnp.float32)
    a = alpha_ref[...].astype(jnp.float32)                   # (1, D)
    var = eps + jnp.mean(x * x, axis=-1, keepdims=True)      # (tile, 1)
    inv = jax.lax.rsqrt(var)
    # (x * inv) first: each multiply has one simple broadcast operand.
    o_ref[...] = ((x * inv) * a).astype(o_ref.dtype)


def _rmsnorm_folded_kernel(x_ref, alpha_ref, o_ref, *, eps, d, fold):
    """Lane-folded path for d < 128 (128 % d == 0).

    Each block row packs `fold` logical rows of width d along the lane axis,
    so the block width is fold*d == 128 and stores are lane-dense. The per-row
    reduction is a segmented sum over static lane slices (VPU/XLU only; the
    kernel stays DMA-bound)."""
    x = x_ref[...].astype(jnp.float32)                        # (tile, fold*d)
    a = alpha_ref[...].astype(jnp.float32)                    # (1, fold*d), alpha tiled
    parts = []
    for g in range(fold):
        xg = x[:, g * d:(g + 1) * d]                          # static lane slice
        var = eps + jnp.mean(xg * xg, axis=-1, keepdims=True)  # (tile, 1)
        parts.append(xg * jax.lax.rsqrt(var))
    y = jnp.concatenate(parts, axis=-1) * a                   # (tile, fold*d)
    o_ref[...] = y.astype(o_ref.dtype)


# ---------------------------------------------------------------------------
# Tiling / launch helpers
# ---------------------------------------------------------------------------
def _vmem_budget_bytes():
    """~55% of physical VMEM (64 MiB v7x, 128 MiB v5e/v6e), capped for safety."""
    try:
        cap = int(pltpu.get_tpu_info().vmem_capacity_bytes)
    except Exception:
        cap = 64 << 20                      # conservative fallback (v7x-sized)
    return int(min(int(cap * 0.55), 96 << 20))


def _pick_row_tile(rows, width, dtype, vmem_budget):
    """Largest row tile bounded by (a) ~2 MiB of DMA per direction per grid
    step and (b) the VMEM budget (double-buffered I/O + f32 temporaries)."""
    itemsize = jnp.dtype(dtype).itemsize
    sub = 8 if itemsize >= 4 else (16 if itemsize == 2 else 32)  # sublane packing
    lane_w = max(128, ((width + 127) // 128) * 128)
    # (a) dtype-aware I/O sizing: ~2 MiB in + ~2 MiB out per step amortizes the
    # ~0.35 us per-grid-step overhead at v5e/v6e/v7x HBM bandwidths.
    io_target = 2 * 1024 * 1024
    tile_io = max(sub, io_target // max(1, width * itemsize))
    # (b) VMEM: 2x double-buffered in+out blocks + ~4 full-width f32 temps
    # (x cast, x*x, x*inv, result) that the compiler materializes.
    per_row_vmem = lane_w * (4 * itemsize + 4 * 4)
    tile_vmem = max(sub, vmem_budget // max(1, per_row_vmem))
    tile = int(min(tile_io, tile_vmem, 8192))
    tile = max(sub, (tile // sub) * sub)
    # Don't over-allocate for small inputs; tile == rows keeps block == array.
    if rows <= tile:
        tile = rows if rows <= sub else max(sub, ((rows + sub - 1) // sub) * sub)
    # v7x megacore: ensure >= 2 grid steps when rows allow it so both
    # TensorCores get rows under dimension_semantics=("parallel",).
    while rows > sub and pl.cdiv(rows, tile) < 2 and tile > sub:
        tile = max(sub, ((tile // 2) // sub) * sub)
    return tile


def _launch(kernel, x2d, a2d, out_dtype):
    rows, width = x2d.shape
    vmem_budget = _vmem_budget_bytes()
    tile = _pick_row_tile(rows, width, x2d.dtype, vmem_budget)
    grid = (pl.cdiv(rows, tile),)           # no padding; partial edge block OK
    return pl.pallas_call(
        kernel,
        out_shape=jax.ShapeDtypeStruct((rows, width), out_dtype),
        grid_spec=pltpu.PrefetchScalarGridSpec(
            num_scalar_prefetch=0,
            grid=grid,
            in_specs=[
                pl.BlockSpec((tile, width), lambda i: (i, 0)),   # x rows
                pl.BlockSpec((1, width), lambda i: (0, 0)),      # alpha (shared)
            ],
            out_specs=pl.BlockSpec((tile, width), lambda i: (i, 0)),
        ),
        compiler_params=pltpu.CompilerParams(
            dimension_semantics=("parallel",),    # shard rows across v7x's 2 TCs
            vmem_limit_bytes=int(vmem_budget),
        ),
    )(x2d, a2d)


# ---------------------------------------------------------------------------
# Public wrapper
# ---------------------------------------------------------------------------
def rms_norm(x, alpha, *, eps=1e-5):
    """x: (B, T, D); alpha: any shape with D elements (e.g. (1, 1, D)).
    Returns the same shape/dtype as x."""
    assert x.ndim == 3, f"RMSNorm expects 3D inputs but got {x.shape}"
    B, T, D = x.shape
    assert alpha.size == D, f"alpha has {alpha.size} elements, expected {D}"
    rows = B * T
    a2d = alpha.reshape(1, D)

    fold = 128 // D if (D < 128 and 128 % D == 0) else 0
    if 2 <= fold <= 16 and rows % fold == 0:
        # Lane-folded path: pack `fold` consecutive rows along the lane axis.
        # Row-major reshape is layout-preserving (no extra HBM traffic).
        x2d = x.reshape(rows // fold, fold * D)
        a_fold = jnp.tile(a2d, (1, fold))
        kern = functools.partial(_rmsnorm_folded_kernel, eps=eps, d=D, fold=fold)
        out2d = _launch(kern, x2d, a_fold, x.dtype)
    else:
        x2d = x.reshape(rows, D)
        kern = functools.partial(_rmsnorm_kernel, eps=eps)
        out2d = _launch(kern, x2d, a2d, x.dtype)

    return out2d.reshape(B, T, D)


def rms_norm_ref(x, alpha, eps=1e-5):
    xf = x.astype(jnp.float32)
    var = eps + jnp.mean(xf * xf, axis=2, keepdims=True)
    return (xf * (alpha.astype(jnp.float32).reshape(1, 1, -1)
                  * jax.lax.rsqrt(var))).astype(x.dtype)


# ---------------------------------------------------------------------------
if __name__ == "__main__":
    # 1) Module-consistent small shape (lane-folded path: D=32 -> fold=4).
    key = jax.random.PRNGKey(0)
    B, T, D = 2, 8, 32
    x = jax.random.normal(key, (B, T, D), dtype=jnp.float32)
    alpha = jnp.ones((1, 1, D), dtype=jnp.float32)   # torch init: full((1,1,dim), 1.0)
    y = rms_norm(x, alpha, eps=1e-5)
    jax.block_until_ready(y)
    assert y.shape == x.shape and y.dtype == x.dtype
    assert jnp.allclose(y, rms_norm_ref(x, alpha), atol=1e-5, rtol=1e-5), "folded mismatch"

    # 2) Standard path with a partial edge block (rows % tile != 0, no padding).
    B2, T2, D2 = 3, 37, 256
    x2 = jax.random.normal(jax.random.PRNGKey(1), (B2, T2, D2), dtype=jnp.float32)
    a2 = jax.random.normal(jax.random.PRNGKey(2), (1, 1, D2), dtype=jnp.float32)
    y2 = rms_norm(x2, a2, eps=1e-5)
    jax.block_until_ready(y2)
    assert jnp.allclose(y2, rms_norm_ref(x2, a2), atol=1e-5, rtol=1e-5), "standard mismatch"

    # 3) Standard path with D < 128 that cannot fold (128 % 48 != 0).
    B3, T3, D3 = 2, 6, 48
    x3 = jax.random.normal(jax.random.PRNGKey(3), (B3, T3, D3), dtype=jnp.float32)
    a3 = jnp.ones((1, 1, D3), dtype=jnp.float32)
    y3 = rms_norm(x3, a3, eps=1e-5)
    jax.block_until_ready(y3)
    assert jnp.allclose(y3, rms_norm_ref(x3, a3), atol=1e-5, rtol=1e-5), "narrow-D mismatch"

    print("KERNEL_OK")
</pallas_src>

<mosaic_0001>
module attributes {stable_mosaic.version = 11 : i64} {
  func.func @_rmsnorm_folded_kernel(%arg0: i32, %arg1: memref<4x128xf32, #tpu.memory_space<vmem>>, %arg2: memref<1x128xf32, #tpu.memory_space<vmem>>, %arg3: memref<4x128xf32, #tpu.memory_space<vmem>>) attributes {dimension_semantics = [#tpu.dimension_semantics<parallel>], iteration_bounds = array<i64: 1>, scalar_prefetch = 0 : i64, scratch_operands = 0 : i64, tpu.core_type = #tpu.core_type<tc>, window_params = [{transform_indices = @transform_0, window_bounds = array<i64: 4, 128>}, {pipeline_mode = #tpu.pipeline_mode<synchronous>, transform_indices = @transform_1, window_bounds = array<i64: 1, 128>}, {transform_indices = @transform_2, window_bounds = array<i64: 4, 128>}]} {
    %c0 = arith.constant 0 : index
    %c0_0 = arith.constant 0 : index
    %0 = vector.load %arg1[%c0, %c0_0] : memref<4x128xf32, #tpu.memory_space<vmem>>, vector<4x128xf32>
    %c0_1 = arith.constant 0 : index
    %c0_2 = arith.constant 0 : index
    %1 = vector.load %arg2[%c0_1, %c0_2] : memref<1x128xf32, #tpu.memory_space<vmem>>, vector<1x128xf32>
    %2 = vector.extract_strided_slice %0 {offsets = [0, 0], sizes = [4, 32], strides = [1, 1]} : vector<4x128xf32> to vector<4x32xf32>
    %3 = arith.mulf %2, %2 : vector<4x32xf32>
    %cst = arith.constant dense<0.000000e+00> : vector<4xf32>
    %4 = vector.multi_reduction <add>, %3, %cst [1] : vector<4x32xf32> to vector<4xf32>
    %5 = vector.shape_cast %4 : vector<4xf32> to vector<4x1xf32>
    %cst_3 = arith.constant 3.200000e+01 : f32
    %6 = vector.broadcast %cst_3 : f32 to vector<4x1xf32>
    %7 = arith.divf %5, %6 : vector<4x1xf32>
    %cst_4 = arith.constant 9.99999974E-6 : f32
    %8 = vector.broadcast %cst_4 : f32 to vector<4x1xf32>
    %9 = arith.addf %8, %7 : vector<4x1xf32>
    %10 = math.rsqrt %9 : vector<4x1xf32>
    %11 = vector.broadcast %10 : vector<4x1xf32> to vector<4x32xf32>
    %12 = arith.mulf %2, %11 : vector<4x32xf32>
    %13 = vector.extract_strided_slice %0 {offsets = [0, 32], sizes = [4, 32], strides = [1, 1]} : vector<4x128xf32> to vector<4x32xf32>
    %14 = arith.mulf %13, %13 : vector<4x32xf32>
    %cst_5 = arith.constant dense<0.000000e+00> : vector<4xf32>
    %15 = vector.multi_reduction <add>, %14, %cst_5 [1] : vector<4x32xf32> to vector<4xf32>
    %16 = vector.shape_cast %15 : vector<4xf32> to vector<4x1xf32>
    %cst_6 = arith.constant 3.200000e+01 : f32
    %17 = vector.broadcast %cst_6 : f32 to vector<4x1xf32>
    %18 = arith.divf %16, %17 : vector<4x1xf32>
    %cst_7 = arith.constant 9.99999974E-6 : f32
    %19 = vector.broadcast %cst_7 : f32 to vector<4x1xf32>
    %20 = arith.addf %19, %18 : vector<4x1xf32>
    %21 = math.rsqrt %20 : vector<4x1xf32>
    %22 = vector.broadcast %21 : vector<4x1xf32> to vector<4x32xf32>
    %23 = arith.mulf %13, %22 : vector<4x32xf32>
    %24 = vector.extract_strided_slice %0 {offsets = [0, 64], sizes = [4, 32], strides = [1, 1]} : vector<4x128xf32> to vector<4x32xf32>
    %25 = arith.mulf %24, %24 : vector<4x32xf32>
    %cst_8 = arith.constant dense<0.000000e+00> : vector<4xf32>
    %26 = vector.multi_reduction <add>, %25, %cst_8 [1] : vector<4x32xf32> to vector<4xf32>
    %27 = vector.shape_cast %26 : vector<4xf32> to vector<4x1xf32>
    %cst_9 = arith.constant 3.200000e+01 : f32
    %28 = vector.broadcast %cst_9 : f32 to vector<4x1xf32>
    %29 = arith.divf %27, %28 : vector<4x1xf32>
    %cst_10 = arith.constant 9.99999974E-6 : f32
    %30 = vector.broadcast %cst_10 : f32 to vector<4x1xf32>
    %31 = arith.addf %30, %29 : vector<4x1xf32>
    %32 = math.rsqrt %31 : vector<4x1xf32>
    %33 = vector.broadcast %32 : vector<4x1xf32> to vector<4x32xf32>
    %34 = arith.mulf %24, %33 : vector<4x32xf32>
    %35 = vector.extract_strided_slice %0 {offsets = [0, 96], sizes = [4, 32], strides = [1, 1]} : vector<4x128xf32> to vector<4x32xf32>
    %36 = arith.mulf %35, %35 : vector<4x32xf32>
    %cst_11 = arith.constant dense<0.000000e+00> : vector<4xf32>
    %37 = vector.multi_reduction <add>, %36, %cst_11 [1] : vector<4x32xf32> to vector<4xf32>
    %38 = vector.shape_cast %37 : vector<4xf32> to vector<4x1xf32>
    %cst_12 = arith.constant 3.200000e+01 : f32
    %39 = vector.broadcast %cst_12 : f32 to vector<4x1xf32>
    %40 = arith.divf %38, %39 : vector<4x1xf32>
    %cst_13 = arith.constant 9.99999974E-6 : f32
    %41 = vector.broadcast %cst_13 : f32 to vector<4x1xf32>
    %42 = arith.addf %41, %40 : vector<4x1xf32>
    %43 = math.rsqrt %42 : vector<4x1xf32>
    %44 = vector.broadcast %43 : vector<4x1xf32> to vector<4x32xf32>
    %45 = arith.mulf %35, %44 : vector<4x32xf32>
    %46 = tpu.concatenate %12, %23, %34, %45 in 1 : vector<4x32xf32>, vector<4x32xf32>, vector<4x32xf32>, vector<4x32xf32> -> vector<4x128xf32>
    %47 = vector.broadcast %1 : vector<1x128xf32> to vector<4x128xf32>
    %48 = arith.mulf %46, %47 : vector<4x128xf32>
    %c0_14 = arith.constant 0 : index
    %c0_15 = arith.constant 0 : index
    %49 = vector.load %arg3[%c0_14, %c0_15] : memref<4x128xf32, #tpu.memory_space<vmem>>, vector<4x128xf32>
    tpu.vector_store %arg3[%c0_14, %c0_15], %48 {strides = array<i32>} : memref<4x128xf32, #tpu.memory_space<vmem>>, vector<4x128xf32>,
    return
  }
  func.func @transform_0(%arg0: i32) -> (i32, i32) {
    %c0_i32 = arith.constant 0 : i32
    %c0_i32_0 = arith.constant 0 : i32
    return %arg0, %c0_i32 : i32, i32
  }
  func.func @transform_1(%arg0: i32) -> (i32, i32) {
    %c0_i32 = arith.constant 0 : i32
    %c0_i32_0 = arith.constant 0 : i32
    %c0_i32_1 = arith.constant 0 : i32
    return %c0_i32, %c0_i32_0 : i32, i32
  }
  func.func @transform_2(%arg0: i32) -> (i32, i32) {
    %c0_i32 = arith.constant 0 : i32
    %c0_i32_0 = arith.constant 0 : i32
    return %arg0, %c0_i32 : i32, i32
  }
}

</mosaic_0001>

<llo_original>
// kernel: tpu_custom_call.1
$region0: #{tpu_custom_call.1}
  #allocation0 [shape = 'u32[]', space=smem, size = 0x4, offset = 0x4, fixed_abs, tag = 'smem constant byte address 0x4 - core index']
  #allocation1 [shape = 'u32[144,128]{1,0:T(1,128)}', space=vmem, size = 0x12000, scoped, tag = 'internal scratch']
  %s0 = inlined_call_operand.hbm [shape: f32[4,128], index: 0, kind: input, shape index: {}]
  %s1 = inlined_call_operand.vmem [shape: f32[1,128], index: 1, kind: input, shape index: {}]
  %s2 = inlined_call_operand.hbm [shape: f32[4,128], index: 2, kind: output, shape index: {}]
  %s3 = sld [smem:[#allocation0]]
  $region22: #{tpu_custom_call.1} parent=0
    _
  %s5 = ssub.s32 1, %s3
  %s6 = scalar_select 0, %s5, %s3
  $region1: #{tpu_custom_call.1} parent=0
    #allocation2 [shape = 'u8[2048]{0}', space=vmem, size = 0x800, scoped, tag = 'input window, operand 0, single buffered']
    #allocation3 [shape = 's32[1]{0}', space=sflag, size = 0x4, scoped, tag = 'scoped memory for tpu_custom_call.1']
    #allocation4 [shape = 's32[1]{0}', space=sflag, size = 0x4, scoped, tag = 'scoped memory for tpu_custom_call.1']
    #allocation5 [shape = 'u8[2048]{0}', space=vmem, size = 0x800, scoped, tag = 'output window, operand 0, single buffered']
    %7 = vsyncpa [#allocation3], 0
    %8 = vsyncpa [#allocation4], 0
    // Predicated region
    $region2: #{tpu_custom_call.1} parent=1 // pred_check
      _
    $region3: #{tpu_custom_call.1} parent=1 // pred_check_branch
      %10 = sbr.rel (0) target = $region5
    $region4: #{tpu_custom_call.1} parent=1 // pred_region
      %s12 = ssub.s32 64, 64
      %13 = vsyncadd [#allocation3], %s12
      %s15 = sshll.u32 [#allocation2], 4
      %s16 = int_to_ptr.vmem [resolvable:$true] %s15
      %18 = dma.hbm_to_vmem [thread:$0]  %s0, 64, %s16, [#allocation3]
    $region5: #{tpu_custom_call.1} parent=1 // pred_fallthru
      _
    // Predicated region
    $region6: #{tpu_custom_call.1} parent=1 // pred_check
      _
    $region7: #{tpu_custom_call.1} parent=1 // pred_check_branch
      %20 = sbr.rel (0) target = $region9
    $region8: #{tpu_custom_call.1} parent=1 // pred_region
      _
    $region9: #{tpu_custom_call.1} parent=1 // pred_fallthru
      _
    // Predicated region
    $region10: #{tpu_custom_call.1} parent=1 // pred_check
      _
    $region11: #{tpu_custom_call.1} parent=1 // pred_check_branch
      %22 = sbr.rel (0) target = $region13
    $region12: #{tpu_custom_call.1} parent=1 // pred_region
      %23 = dma.done [#allocation3], 64
    $region13: #{tpu_custom_call.1} parent=1 // pred_fallthru
      _
    %v24 = vld [vmem:[#allocation2] sm:$0xf]
    %v25 = vld [vmem:[%s1] sm:$0x1]
    %v26 = vmul.f32 %v24, %v24
    %vm27 = vcmask 257024
    %v28 = vsel %vm27, %v26, 0.0
    %29 = vadd.xlane.f32.xlu0 %v28
    %v30 = vpop.xlane.xlu0 %29
    %v31 = vrcp.pop 32.0
    %v32 = vmul.f32 %v30, %v31
    %v33 = vadd.f32 %v32, 1e-05
    %v34 = vrsqrt.pop %v33
    %v35 = vmul.f32 %v24, %v34
    %37 = vrot.lane.b32.xlu0 %v26, 96
    %v38 = vpop.permute.xlu0 %37
    %v40 = vsel %vm27, %v38, 0.0
    %41 = vadd.xlane.f32.xlu0 %v40
    %v42 = vpop.xlane.xlu0 %41
    %v43 = vmul.f32 %v42, %v31
    %v44 = vadd.f32 %v43, 1e-05
    %v45 = vrsqrt.pop %v44
    %v46 = vmul.f32 %v24, %v45
    %47 = vrot.lane.b32.xlu0 %v26, 64
    %v48 = vpop.permute.xlu0 %47
    %v50 = vsel %vm27, %v48, 0.0
    %51 = vadd.xlane.f32.xlu0 %v50
    %v52 = vpop.xlane.xlu0 %51
    %v53 = vmul.f32 %v52, %v31
    %v54 = vadd.f32 %v53, 1e-05
    %v55 = vrsqrt.pop %v54
    %v56 = vmul.f32 %v24, %v55
    %57 = vrot.lane.b32.xlu0 %v26, 32
    %v58 = vpop.permute.xlu0 %57
    %v60 = vsel %vm27, %v58, 0.0
    %61 = vadd.xlane.f32.xlu0 %v60
    %v62 = vpop.xlane.xlu0 %61
    %v63 = vmul.f32 %v62, %v31
    %v64 = vadd.f32 %v63, 1e-05
    %v65 = vrsqrt.pop %v64
    %v66 = vmul.f32 %v24, %v65
    %vm67 = vcmask 261120
    %v68 = vsel %vm67, %v35, %v46
    %vm69 = vcmask 523264
    %v70 = vsel %vm69, %v68, %v56
    %vm71 = vcmask 785408
    %v72 = vsel %vm71, %v70, %v66
    %v74 = vlaneseq
    %v75 = vshrl.u32 %v74, 7
    %v76 = vsub.s32 0, %v75
    %v77 = vrot.slane %v25, %v76
    %v79 = vmul.f32 %v72, %v77
    %80 = vst [vmem:[#allocation5] sm:$0xf] %v79
    // Predicated region
    $region14: #{tpu_custom_call.1} parent=1 // pred_check
      _
    $region15: #{tpu_custom_call.1} parent=1 // pred_check_branch
      %82 = sbr.rel (0) target = $region17
    $region16: #{tpu_custom_call.1} parent=1 // pred_region
      %s84 = ssub.s32 64, 64
      %85 = vsyncadd [#allocation4], %s84
      %s87 = sshll.u32 [#allocation5], 4
      %s88 = int_to_ptr.vmem [resolvable:$true] %s87
      %90 = dma.vmem_to_hbm [thread:$0]  %s88, 64, %s2, [#allocation4]
    $region17: #{tpu_custom_call.1} parent=1 // pred_fallthru
      _
    // Predicated region
    $region18: #{tpu_custom_call.1} parent=1 // pred_check
      _
    $region19: #{tpu_custom_call.1} parent=1 // pred_check_branch
      %92 = sbr.rel (0) target = $region21
    $region20: #{tpu_custom_call.1} parent=1 // pred_region
      %93 = dma.done [#allocation4], 64
    $region21: #{tpu_custom_call.1} parent=1 // pred_fallthru
      _
    %94 = vsyncpa [#allocation3], 1
    %95 = vsyncpa [#allocation4], 1

</llo_original>
